<compile_context>
chip_gen: v6e
topology: v6e:2x2x1
jax: 0.10.0
libtpu: 0.0.40
codegen_flags: <defaults>
</compile_context>

<pallas_src>
import functools

import numpy as np
import jax
import jax.numpy as jnp
from jax import lax
from jax.experimental import pallas as pl
from jax.experimental.pallas import tpu as pltpu


# ---------------------------------------------------------------------------
# VMEM budgeting / tiling heuristics
# ---------------------------------------------------------------------------
def _vmem_budgets():
    """(slab_budget, vmem_limit) derived from the actual device generation."""
    cap = None
    try:
        cap = getattr(pltpu.get_tpu_info(), "vmem_capacity_bytes", None)
    except Exception:
        cap = None
    if not cap or cap <= 0:
        cap = 64 * 1024 * 1024                    # v7x-safe default (64 MiB/TC)
    slab_budget = int(cap * 0.55)                 # bytes we plan to keep live
    vmem_limit = min(int(cap * 0.85), 128 * 1024 * 1024)
    return slab_budget, vmem_limit


def _sublane_align(itemsize):
    # f32 packs (8,128) per vreg tile; bf16 (16,128); 8-bit (32,128).
    return 8 * max(1, 4 // int(itemsize))


def _pick_block_c(C, N, HW, itemsize, budget_bytes):
    """Channel tile for the fused single-pass kernel, or None -> two-pass.

    Live-VMEM model per channel of tile (fused real+imag kernel):
      2 inputs x 2 double-buffers x itemsize
      2 outputs x 2 double-buffers x itemsize
      ~4 f32 arithmetic temporaries (upcast x, x*x, y-before-cast, slack)
    """
    per_chan = N * HW * (8 * itemsize + 4 * 4)
    align = _sublane_align(itemsize)
    min_cb = C if C < align else align
    cb = int(budget_bytes // per_chan)
    if cb < min_cb:
        return None                               # smallest legal tile overshoots
    if cb >= C:
        cb = C
    else:
        cb = (cb // align) * align                # legal: multiple of align
    # Never let the grid collapse when channels permit legal tiles: keep >= 2
    # steps (>= 8 for wide layers) so the DMA pipeline overlaps compute and the
    # "parallel" channel axis can split across TensorCores (v7x megacore).
    if C >= 2 * align:
        target_steps = 8 if C >= 8 * align else 2
        cap = max(align, ((C // target_steps) // align) * align)
        cb = min(cb, cap)
    return cb


def _pick_block_hw(HW, N, cb, live_bytes_per_elem, budget_bytes):
    """Lane (H*W) tile for the two-pass kernels: multiple of 128 or full HW."""
    per_hw = max(1, N * cb * live_bytes_per_elem)
    hwb = int(budget_bytes // per_hw)
    if hwb >= HW or HW <= 128:
        return HW
    return max(128, (hwb // 128) * 128)


# ---------------------------------------------------------------------------
# Fused single-pass kernel (real + imag BatchNorm2d, training)
# ---------------------------------------------------------------------------
def _fused_bn2d_train_kernel(xr_ref, xi_ref, pr_ref, pi_ref,
                             yr_ref, yi_ref, sr_ref, si_ref,
                             *, inv_m, bessel, eps, momentum):
    """One channel tile of both BNs.

    x*_ref : (N, Cb, HW) input slab, native dtype (upcast to f32 in VMEM)
    p*_ref : (Cb, 4)     packed f32 params [gamma, beta, running_mean, running_var]
    y*_ref : (N, Cb, HW) output slab, same dtype as the input
    s*_ref : (Cb, 2)     packed f32 new running stats [mean_ema, var_ema]
    """

    def bn_one(x_ref, p_ref, y_ref, s_ref):
        x = x_ref[...].astype(jnp.float32)                       # (N, Cb, HW)

        # Single traversal: sum(x) and sum(x*x); lane reduce first, then batch.
        s1 = jnp.sum(jnp.sum(x, axis=2, keepdims=True), axis=0, keepdims=True)
        s2 = jnp.sum(jnp.sum(x * x, axis=2, keepdims=True), axis=0, keepdims=True)
        mean = s1 * inv_m                                         # (1, Cb, 1)
        var = jnp.maximum((s2 - s1 * mean) * inv_m, 0.0)          # biased var

        gamma = p_ref[:, 0:1][None]                               # (1, Cb, 1)
        beta = p_ref[:, 1:2][None]
        rmean = p_ref[:, 2:3][None]
        rvar = p_ref[:, 3:4][None]

        inv_std = lax.rsqrt(var + eps)
        scale = gamma * inv_std
        shift = beta - mean * scale
        y_ref[...] = (x * scale + shift).astype(y_ref.dtype)      # 2 VALU ops/elem

        # PyTorch EMA: new = (1 - momentum) * old + momentum * batch_stat
        s_ref[:, 0:1] = (1.0 - momentum) * rmean[0] + momentum * mean[0]
        s_ref[:, 1:2] = (1.0 - momentum) * rvar[0] + momentum * (bessel * var[0])

    bn_one(xr_ref, pr_ref, yr_ref, sr_ref)
    bn_one(xi_ref, pi_ref, yi_ref, si_ref)


# ---------------------------------------------------------------------------
# Two-pass fallback kernels (for huge N*H*W per channel)
# ---------------------------------------------------------------------------
def _stats_kernel(x_ref, s_ref, *, hw_total, hwb):
    """Accumulate per-channel [sum, sumsq] over an H*W-tiled reduction axis."""
    hw_i = pl.program_id(1)

    @pl.when(hw_i == 0)
    def _():
        s_ref[...] = jnp.zeros_like(s_ref)

    x = x_ref[...].astype(jnp.float32)                            # (N, Cb, hwb)
    if hw_total % hwb != 0:
        # Mask padded lanes of the trailing HW block so they don't pollute sums.
        lane = lax.broadcasted_iota(jnp.int32, x.shape, 2) + hw_i * hwb
        x = jnp.where(lane < hw_total, x, 0.0)
    s1 = jnp.sum(jnp.sum(x, axis=2, keepdims=True), axis=0, keepdims=True)
    s2 = jnp.sum(jnp.sum(x * x, axis=2, keepdims=True), axis=0, keepdims=True)
    s_ref[:, 0:1] += s1[0]
    s_ref[:, 1:2] += s2[0]


def _apply_kernel(x_ref, ss_ref, y_ref):
    """y = x * scale + shift, folded per-channel normalization."""
    x = x_ref[...].astype(jnp.float32)
    scale = ss_ref[:, 0:1][None]
    shift = ss_ref[:, 1:2][None]
    y_ref[...] = (x * scale + shift).astype(y_ref.dtype)


def _bn2d_two_pass(x, gamma, beta, rmean, rvar, *, eps, momentum,
                   slab_budget, vmem_limit):
    """Fallback when one channel's full (N, H*W) slab does not fit VMEM."""
    N, C, H, W = x.shape
    HW = H * W
    M = N * HW
    itemsize = np.dtype(x.dtype).itemsize
    x3 = x.reshape(N, C, HW)

    align = _sublane_align(itemsize)
    cb = C if C < align else align

    # ---- pass 1: per-channel sum / sumsq ----------------------------------
    hwb1 = _pick_block_hw(HW, N, cb, 2 * itemsize + 3 * 4, slab_budget)
    stats = pl.pallas_call(
        functools.partial(_stats_kernel, hw_total=HW, hwb=hwb1),
        out_shape=jax.ShapeDtypeStruct((C, 2), jnp.float32),
        grid_spec=pltpu.PrefetchScalarGridSpec(
            num_scalar_prefetch=0,
            grid=(pl.cdiv(C, cb), pl.cdiv(HW, hwb1)),
            in_specs=[pl.BlockSpec((N, cb, hwb1), lambda c, h: (0, c, h))],
            out_specs=pl.BlockSpec((cb, 2), lambda c, h: (c, 0)),
        ),
        compiler_params=pltpu.CompilerParams(
            dimension_semantics=("parallel", "arbitrary"),
            vmem_limit_bytes=vmem_limit,
        ),
    )(x3)

    # ---- tiny O(C) stat math in plain XLA ----------------------------------
    s1 = stats[:, 0]
    s2 = stats[:, 1]
    inv_m = 1.0 / M
    mean = s1 * inv_m
    var = jnp.maximum((s2 - s1 * mean) * inv_m, 0.0)              # biased
    inv_std = lax.rsqrt(var + eps)
    scale = gamma.astype(jnp.float32) * inv_std
    shift = beta.astype(jnp.float32) - mean * scale
    new_rm = (1.0 - momentum) * rmean.astype(jnp.float32) + momentum * mean
    new_rv = (1.0 - momentum) * rvar.astype(jnp.float32) + momentum * (var * (M / (M - 1.0)))
    ss = jnp.stack([scale, shift], axis=1)                        # (C, 2)

    # ---- pass 2: apply folded scale/shift ----------------------------------
    hwb2 = _pick_block_hw(HW, N, cb, 4 * itemsize + 2 * 4, slab_budget)
    y3 = pl.pallas_call(
        _apply_kernel,
        out_shape=jax.ShapeDtypeStruct((N, C, HW), x.dtype),
        grid_spec=pltpu.PrefetchScalarGridSpec(
            num_scalar_prefetch=0,
            grid=(pl.cdiv(C, cb), pl.cdiv(HW, hwb2)),
            in_specs=[pl.BlockSpec((N, cb, hwb2), lambda c, h: (0, c, h)),
                      pl.BlockSpec((cb, 2), lambda c, h: (c, 0))],
            out_specs=pl.BlockSpec((N, cb, hwb2), lambda c, h: (0, c, h)),
        ),
        compiler_params=pltpu.CompilerParams(
            dimension_semantics=("parallel", "parallel"),
            vmem_limit_bytes=vmem_limit,
        ),
    )(x3, ss)
    return y3.reshape(N, C, H, W), new_rm, new_rv


# ---------------------------------------------------------------------------
# Public wrapper: nComplexBatchNorm2d forward (training mode)
# ---------------------------------------------------------------------------
def n_complex_batch_norm_2d(x_r, x_i,
                            gamma_r, beta_r, rm_r, rv_r,
                            gamma_i, beta_i, rm_i, rv_i,
                            *, eps=1e-5, momentum=0.1,
                            block_c=None, force_two_pass=False):
    """Independent training-mode BatchNorm2d on the real and imaginary parts.

    Returns ((y_r, y_i), (new_rm_r, new_rv_r, new_rm_i, new_rv_i)).
    """
    assert x_r.shape == x_i.shape and x_r.dtype == x_i.dtype
    N, C, H, W = x_r.shape
    HW = H * W
    M = N * HW
    assert M > 1, "BatchNorm2d training requires more than one element per channel"

    slab_budget, vmem_limit = _vmem_budgets()
    itemsize = np.dtype(x_r.dtype).itemsize

    cb = block_c if block_c is not None else _pick_block_c(C, N, HW, itemsize, slab_budget)
    if force_two_pass or cb is None:
        y_r, nrm_r, nrv_r = _bn2d_two_pass(
            x_r, gamma_r, beta_r, rm_r, rv_r, eps=eps, momentum=momentum,
            slab_budget=slab_budget, vmem_limit=vmem_limit)
        y_i, nrm_i, nrv_i = _bn2d_two_pass(
            x_i, gamma_i, beta_i, rm_i, rv_i, eps=eps, momentum=momentum,
            slab_budget=slab_budget, vmem_limit=vmem_limit)
        return (y_r, y_i), (nrm_r, nrv_r, nrm_i, nrv_i)

    # Fused single-pass path. Free reshapes only; x stays in its native dtype.
    x3_r = x_r.reshape(N, C, HW)
    x3_i = x_i.reshape(N, C, HW)
    p_r = jnp.stack([gamma_r, beta_r, rm_r, rv_r], axis=1).astype(jnp.float32)  # (C, 4)
    p_i = jnp.stack([gamma_i, beta_i, rm_i, rv_i], axis=1).astype(jnp.float32)

    kernel = functools.partial(
        _fused_bn2d_train_kernel,
        inv_m=float(1.0 / M),
        bessel=float(M / (M - 1.0)),
        eps=float(eps),
        momentum=float(momentum),
    )

    cost = pl.CostEstimate(
        flops=int(10 * N * C * HW),
        transcendentals=int(2 * C),
        bytes_accessed=int(4 * itemsize * N * C * HW + 12 * 4 * C),
    )

    y3_r, y3_i, s_r, s_i = pl.pallas_call(
        kernel,
        out_shape=(
            jax.ShapeDtypeStruct((N, C, HW), x_r.dtype),
            jax.ShapeDtypeStruct((N, C, HW), x_i.dtype),
            jax.ShapeDtypeStruct((C, 2), jnp.float32),
            jax.ShapeDtypeStruct((C, 2), jnp.float32),
        ),
        grid_spec=pltpu.PrefetchScalarGridSpec(
            num_scalar_prefetch=0,
            grid=(pl.cdiv(C, cb),),
            in_specs=[
                pl.BlockSpec((N, cb, HW), lambda c: (0, c, 0)),   # x real slab
                pl.BlockSpec((N, cb, HW), lambda c: (0, c, 0)),   # x imag slab
                pl.BlockSpec((cb, 4), lambda c: (c, 0)),          # packed params (real)
                pl.BlockSpec((cb, 4), lambda c: (c, 0)),          # packed params (imag)
            ],
            out_specs=[
                pl.BlockSpec((N, cb, HW), lambda c: (0, c, 0)),   # y real slab
                pl.BlockSpec((N, cb, HW), lambda c: (0, c, 0)),   # y imag slab
                pl.BlockSpec((cb, 2), lambda c: (c, 0)),          # running stats (real)
                pl.BlockSpec((cb, 2), lambda c: (c, 0)),          # running stats (imag)
            ],
        ),
        compiler_params=pltpu.CompilerParams(
            dimension_semantics=("parallel",),
            vmem_limit_bytes=vmem_limit,
        ),
        cost_estimate=cost,
    )(x3_r, x3_i, p_r, p_i)
    # TODO(synk): when callers donate x and dtypes match, add
    # input_output_aliases={0: 0, 1: 1} to drop the extra HBM output buffers.

    y_r = y3_r.reshape(N, C, H, W)
    y_i = y3_i.reshape(N, C, H, W)
    return (y_r, y_i), (s_r[:, 0], s_r[:, 1], s_i[:, 0], s_i[:, 1])


# ---------------------------------------------------------------------------
# Pure-JAX reference (port of torch.nn.BatchNorm2d training forward)
# ---------------------------------------------------------------------------
def _bn2d_reference(x, gamma, beta, running_mean, running_var, eps, momentum):
    xf = x.astype(jnp.float32)
    dims = (0, 2, 3)
    mean = xf.mean(dims)
    var = xf.var(dims)                       # biased, used for normalization
    n = x.shape[0] * x.shape[2] * x.shape[3]
    var_unbiased = var * n / (n - 1)
    bc = lambda v: v[None, :, None, None]
    y = (xf - bc(mean)) / jnp.sqrt(bc(var) + eps) * bc(gamma) + bc(beta)
    new_rm = (1 - momentum) * running_mean + momentum * mean
    new_rv = (1 - momentum) * running_var + momentum * var_unbiased
    return y.astype(x.dtype), new_rm, new_rv


if __name__ == "__main__":
    # TODO(synk): eval-mode branch (normalize with running stats) and the
    # num_batches_tracked counter are not implemented; training forward only.
    N, C, H, W = 2, 4, 16, 16
    key = jax.random.PRNGKey(0)
    k = jax.random.split(key, 6)

    x_r = jax.random.normal(k[0], (N, C, H, W), dtype=jnp.float32)
    x_i = jax.random.normal(k[1], (N, C, H, W), dtype=jnp.float32)

    # BatchNorm2d defaults are gamma=1, beta=0, running_mean=0, running_var=1;
    # perturb the affine params so the affine path is actually exercised.
    gamma_r = 1.0 + 0.1 * jax.random.normal(k[2], (C,), dtype=jnp.float32)
    beta_r = 0.1 * jax.random.normal(k[3], (C,), dtype=jnp.float32)
    gamma_i = 1.0 + 0.1 * jax.random.normal(k[4], (C,), dtype=jnp.float32)
    beta_i = 0.1 * jax.random.normal(k[5], (C,), dtype=jnp.float32)
    rm_r = jnp.zeros((C,), jnp.float32)
    rv_r = jnp.ones((C,), jnp.float32)
    rm_i = jnp.zeros((C,), jnp.float32)
    rv_i = jnp.ones((C,), jnp.float32)

    args = (x_r, x_i, gamma_r, beta_r, rm_r, rv_r, gamma_i, beta_i, rm_i, rv_i)

    ref_r = _bn2d_reference(x_r, gamma_r, beta_r, rm_r, rv_r, 1e-5, 0.1)
    ref_i = _bn2d_reference(x_i, gamma_i, beta_i, rm_i, rv_i, 1e-5, 0.1)
    want = (*ref_r, *ref_i)   # y_r, nrm_r, nrv_r, y_i, nrm_i, nrv_i

    # --- fused single-pass path ---------------------------------------------
    (y_r, y_i), (nrm_r, nrv_r, nrm_i, nrv_i) = n_complex_batch_norm_2d(
        *args, eps=1e-5, momentum=0.1)
    got = jax.block_until_ready((y_r, nrm_r, nrv_r, y_i, nrm_i, nrv_i))
    for g, w in zip(got, want):
        np.testing.assert_allclose(np.asarray(g), np.asarray(w),
                                   rtol=1e-4, atol=1e-5)

    # --- two-pass fallback path (forced, validates the large-N*H*W route) ---
    (y_r2, y_i2), (nrm_r2, nrv_r2, nrm_i2, nrv_i2) = n_complex_batch_norm_2d(
        *args, eps=1e-5, momentum=0.1, force_two_pass=True)
    got2 = jax.block_until_ready((y_r2, nrm_r2, nrv_r2, y_i2, nrm_i2, nrv_i2))
    for g, w in zip(got2, want):
        np.testing.assert_allclose(np.asarray(g), np.asarray(w),
                                   rtol=1e-4, atol=1e-5)

    # --- bf16 I/O path (dtype handled inside the kernel) ---------------------
    xb_r = x_r.astype(jnp.bfloat16)
    xb_i = x_i.astype(jnp.bfloat16)
    (yb_r, yb_i), (brm_r, brv_r, brm_i, brv_i) = n_complex_batch_norm_2d(
        xb_r, xb_i, gamma_r, beta_r, rm_r, rv_r, gamma_i, beta_i, rm_i, rv_i,
        eps=1e-5, momentum=0.1)
    gotb = jax.block_until_ready((yb_r, brm_r, brv_r, yb_i, brm_i, brv_i))
    assert yb_r.dtype == jnp.bfloat16 and yb_i.dtype == jnp.bfloat16
    refb_r = _bn2d_reference(xb_r, gamma_r, beta_r, rm_r, rv_r, 1e-5, 0.1)
    refb_i = _bn2d_reference(xb_i, gamma_i, beta_i, rm_i, rv_i, 1e-5, 0.1)
    wantb = (*refb_r, *refb_i)
    for g, w in zip(gotb, wantb):
        np.testing.assert_allclose(
            np.asarray(jnp.asarray(g, jnp.float32)),
            np.asarray(jnp.asarray(w, jnp.float32)),
            rtol=2e-2, atol=2e-2)

    print("KERNEL_OK")
</pallas_src>

<mosaic_0001>
module attributes {stable_mosaic.version = 11 : i64} {
  func.func @_fused_bn2d_train_kernel(%arg0: i32, %arg1: memref<2x4x256xf32, #tpu.memory_space<vmem>>, %arg2: memref<2x4x256xf32, #tpu.memory_space<vmem>>, %arg3: memref<4x4xf32, #tpu.memory_space<vmem>>, %arg4: memref<4x4xf32, #tpu.memory_space<vmem>>, %arg5: memref<2x4x256xf32, #tpu.memory_space<vmem>>, %arg6: memref<2x4x256xf32, #tpu.memory_space<vmem>>, %arg7: memref<4x2xf32, #tpu.memory_space<vmem>>, %arg8: memref<4x2xf32, #tpu.memory_space<vmem>>) attributes {dimension_semantics = [#tpu.dimension_semantics<parallel>], iteration_bounds = array<i64: 1>, scalar_prefetch = 0 : i64, scratch_operands = 0 : i64, tpu.core_type = #tpu.core_type<tc>, window_params = [{transform_indices = @transform_0, window_bounds = array<i64: 2, 4, 256>}, {transform_indices = @transform_1, window_bounds = array<i64: 2, 4, 256>}, {transform_indices = @transform_2, window_bounds = array<i64: 4, 4>}, {transform_indices = @transform_3, window_bounds = array<i64: 4, 4>}, {transform_indices = @transform_4, window_bounds = array<i64: 2, 4, 256>}, {transform_indices = @transform_5, window_bounds = array<i64: 2, 4, 256>}, {transform_indices = @transform_6, window_bounds = array<i64: 4, 2>}, {transform_indices = @transform_7, window_bounds = array<i64: 4, 2>}]} {
    %c0 = arith.constant 0 : index
    %c0_0 = arith.constant 0 : index
    %c0_1 = arith.constant 0 : index
    %0 = vector.load %arg1[%c0, %c0_0, %c0_1] : memref<2x4x256xf32, #tpu.memory_space<vmem>>, vector<2x4x256xf32>
    %cst = arith.constant dense<0.000000e+00> : vector<2x4xf32>
    %1 = vector.multi_reduction <add>, %0, %cst [2] : vector<2x4x256xf32> to vector<2x4xf32>
    %2 = vector.shape_cast %1 : vector<2x4xf32> to vector<2x4x1xf32>
    %cst_2 = arith.constant dense<0.000000e+00> : vector<4x1xf32>
    %3 = vector.multi_reduction <add>, %2, %cst_2 [0] : vector<2x4x1xf32> to vector<4x1xf32>
    %4 = vector.shape_cast %3 : vector<4x1xf32> to vector<1x4x1xf32>
    %5 = arith.mulf %0, %0 : vector<2x4x256xf32>
    %cst_3 = arith.constant dense<0.000000e+00> : vector<2x4xf32>
    %6 = vector.multi_reduction <add>, %5, %cst_3 [2] : vector<2x4x256xf32> to vector<2x4xf32>
    %7 = vector.shape_cast %6 : vector<2x4xf32> to vector<2x4x1xf32>
    %cst_4 = arith.constant dense<0.000000e+00> : vector<4x1xf32>
    %8 = vector.multi_reduction <add>, %7, %cst_4 [0] : vector<2x4x1xf32> to vector<4x1xf32>
    %9 = vector.shape_cast %8 : vector<4x1xf32> to vector<1x4x1xf32>
    %cst_5 = arith.constant 0.001953125 : f32
    %10 = vector.broadcast %cst_5 : f32 to vector<1x4x1xf32>
    %11 = arith.mulf %4, %10 : vector<1x4x1xf32>
    %12 = arith.mulf %4, %11 : vector<1x4x1xf32>
    %13 = arith.subf %9, %12 : vector<1x4x1xf32>
    %cst_6 = arith.constant 0.001953125 : f32
    %14 = vector.broadcast %cst_6 : f32 to vector<1x4x1xf32>
    %15 = arith.mulf %13, %14 : vector<1x4x1xf32>
    %cst_7 = arith.constant 0.000000e+00 : f32
    %16 = vector.broadcast %cst_7 : f32 to vector<1x4x1xf32>
    %17 = arith.maximumf %15, %16 : vector<1x4x1xf32>
    %c0_8 = arith.constant 0 : index
    %c0_9 = arith.constant 0 : index
    %18 = vector.load %arg3[%c0_8, %c0_9] : memref<4x4xf32, #tpu.memory_space<vmem>>, vector<4x1xf32>
    %19 = vector.shape_cast %18 : vector<4x1xf32> to vector<1x4x1xf32>
    %c0_10 = arith.constant 0 : index
    %c1 = arith.constant 1 : index
    %20 = vector.load %arg3[%c0_10, %c1] : memref<4x4xf32, #tpu.memory_space<vmem>>, vector<4x1xf32>
    %21 = vector.shape_cast %20 : vector<4x1xf32> to vector<1x4x1xf32>
    %c0_11 = arith.constant 0 : index
    %c2 = arith.constant 2 : index
    %22 = vector.load %arg3[%c0_11, %c2] : memref<4x4xf32, #tpu.memory_space<vmem>>, vector<4x1xf32>
    %23 = vector.shape_cast %22 : vector<4x1xf32> to vector<1x4x1xf32>
    %c0_12 = arith.constant 0 : index
    %c3 = arith.constant 3 : index
    %24 = vector.load %arg3[%c0_12, %c3] : memref<4x4xf32, #tpu.memory_space<vmem>>, vector<4x1xf32>
    %25 = vector.shape_cast %24 : vector<4x1xf32> to vector<1x4x1xf32>
    %cst_13 = arith.constant 9.99999974E-6 : f32
    %26 = vector.broadcast %cst_13 : f32 to vector<1x4x1xf32>
    %27 = arith.addf %17, %26 : vector<1x4x1xf32>
    %28 = math.rsqrt %27 : vector<1x4x1xf32>
    %29 = arith.mulf %19, %28 : vector<1x4x1xf32>
    %30 = arith.mulf %11, %29 : vector<1x4x1xf32>
    %31 = arith.subf %21, %30 : vector<1x4x1xf32>
    %32 = vector.broadcast %29 : vector<1x4x1xf32> to vector<2x4x256xf32>
    %33 = arith.mulf %0, %32 : vector<2x4x256xf32>
    %34 = vector.broadcast %31 : vector<1x4x1xf32> to vector<2x4x256xf32>
    %35 = arith.addf %33, %34 : vector<2x4x256xf32>
    %c0_14 = arith.constant 0 : index
    %c0_15 = arith.constant 0 : index
    %c0_16 = arith.constant 0 : index
    %36 = vector.load %arg5[%c0_14, %c0_15, %c0_16] : memref<2x4x256xf32, #tpu.memory_space<vmem>>, vector<2x4x256xf32>
    tpu.vector_store %arg5[%c0_14, %c0_15, %c0_16], %35 {strides = array<i32>} : memref<2x4x256xf32, #tpu.memory_space<vmem>>, vector<2x4x256xf32>,
    %37 = vector.shape_cast %23 : vector<1x4x1xf32> to vector<4x1xf32>
    %cst_17 = arith.constant 0.899999976 : f32
    %38 = vector.broadcast %cst_17 : f32 to vector<4x1xf32>
    %39 = arith.mulf %38, %37 : vector<4x1xf32>
    %40 = vector.shape_cast %11 : vector<1x4x1xf32> to vector<4x1xf32>
    %cst_18 = arith.constant 1.000000e-01 : f32
    %41 = vector.broadcast %cst_18 : f32 to vector<4x1xf32>
    %42 = arith.mulf %41, %40 : vector<4x1xf32>
    %43 = arith.addf %39, %42 : vector<4x1xf32>
    %c0_19 = arith.constant 0 : index
    %c0_20 = arith.constant 0 : index
    %44 = vector.load %arg7[%c0_19, %c0_20] : memref<4x2xf32, #tpu.memory_space<vmem>>, vector<4x1xf32>
    tpu.vector_store %arg7[%c0_19, %c0_20], %43 {strides = array<i32>} : memref<4x2xf32, #tpu.memory_space<vmem>>, vector<4x1xf32>,
    %45 = vector.shape_cast %25 : vector<1x4x1xf32> to vector<4x1xf32>
    %cst_21 = arith.constant 0.899999976 : f32
    %46 = vector.broadcast %cst_21 : f32 to vector<4x1xf32>
    %47 = arith.mulf %46, %45 : vector<4x1xf32>
    %48 = vector.shape_cast %17 : vector<1x4x1xf32> to vector<4x1xf32>
    %cst_22 = arith.constant 1.00195694 : f32
    %49 = vector.broadcast %cst_22 : f32 to vector<4x1xf32>
    %50 = arith.mulf %49, %48 : vector<4x1xf32>
    %cst_23 = arith.constant 1.000000e-01 : f32
    %51 = vector.broadcast %cst_23 : f32 to vector<4x1xf32>
    %52 = arith.mulf %51, %50 : vector<4x1xf32>
    %53 = arith.addf %47, %52 : vector<4x1xf32>
    %c0_24 = arith.constant 0 : index
    %c1_25 = arith.constant 1 : index
    %54 = vector.load %arg7[%c0_24, %c1_25] : memref<4x2xf32, #tpu.memory_space<vmem>>, vector<4x1xf32>
    tpu.vector_store %arg7[%c0_24, %c1_25], %53 {strides = array<i32>} : memref<4x2xf32, #tpu.memory_space<vmem>>, vector<4x1xf32>,
    %c0_26 = arith.constant 0 : index
    %c0_27 = arith.constant 0 : index
    %c0_28 = arith.constant 0 : index
    %55 = vector.load %arg2[%c0_26, %c0_27, %c0_28] : memref<2x4x256xf32, #tpu.memory_space<vmem>>, vector<2x4x256xf32>
    %cst_29 = arith.constant dense<0.000000e+00> : vector<2x4xf32>
    %56 = vector.multi_reduction <add>, %55, %cst_29 [2] : vector<2x4x256xf32> to vector<2x4xf32>
    %57 = vector.shape_cast %56 : vector<2x4xf32> to vector<2x4x1xf32>
    %cst_30 = arith.constant dense<0.000000e+00> : vector<4x1xf32>
    %58 = vector.multi_reduction <add>, %57, %cst_30 [0] : vector<2x4x1xf32> to vector<4x1xf32>
    %59 = vector.shape_cast %58 : vector<4x1xf32> to vector<1x4x1xf32>
    %60 = arith.mulf %55, %55 : vector<2x4x256xf32>
    %cst_31 = arith.constant dense<0.000000e+00> : vector<2x4xf32>
    %61 = vector.multi_reduction <add>, %60, %cst_31 [2] : vector<2x4x256xf32> to vector<2x4xf32>
    %62 = vector.shape_cast %61 : vector<2x4xf32> to vector<2x4x1xf32>
    %cst_32 = arith.constant dense<0.000000e+00> : vector<4x1xf32>
    %63 = vector.multi_reduction <add>, %62, %cst_32 [0] : vector<2x4x1xf32> to vector<4x1xf32>
    %64 = vector.shape_cast %63 : vector<4x1xf32> to vector<1x4x1xf32>
    %cst_33 = arith.constant 0.001953125 : f32
    %65 = vector.broadcast %cst_33 : f32 to vector<1x4x1xf32>
    %66 = arith.mulf %59, %65 : vector<1x4x1xf32>
    %67 = arith.mulf %59, %66 : vector<1x4x1xf32>
    %68 = arith.subf %64, %67 : vector<1x4x1xf32>
    %cst_34 = arith.constant 0.001953125 : f32
    %69 = vector.broadcast %cst_34 : f32 to vector<1x4x1xf32>
    %70 = arith.mulf %68, %69 : vector<1x4x1xf32>
    %cst_35 = arith.constant 0.000000e+00 : f32
    %71 = vector.broadcast %cst_35 : f32 to vector<1x4x1xf32>
    %72 = arith.maximumf %70, %71 : vector<1x4x1xf32>
    %c0_36 = arith.constant 0 : index
    %c0_37 = arith.constant 0 : index
    %73 = vector.load %arg4[%c0_36, %c0_37] : memref<4x4xf32, #tpu.memory_space<vmem>>, vector<4x1xf32>
    %74 = vector.shape_cast %73 : vector<4x1xf32> to vector<1x4x1xf32>
    %c0_38 = arith.constant 0 : index
    %c1_39 = arith.constant 1 : index
    %75 = vector.load %arg4[%c0_38, %c1_39] : memref<4x4xf32, #tpu.memory_space<vmem>>, vector<4x1xf32>
    %76 = vector.shape_cast %75 : vector<4x1xf32> to vector<1x4x1xf32>
    %c0_40 = arith.constant 0 : index
    %c2_41 = arith.constant 2 : index
    %77 = vector.load %arg4[%c0_40, %c2_41] : memref<4x4xf32, #tpu.memory_space<vmem>>, vector<4x1xf32>
    %78 = vector.shape_cast %77 : vector<4x1xf32> to vector<1x4x1xf32>
    %c0_42 = arith.constant 0 : index
    %c3_43 = arith.constant 3 : index
    %79 = vector.load %arg4[%c0_42, %c3_43] : memref<4x4xf32, #tpu.memory_space<vmem>>, vector<4x1xf32>
    %80 = vector.shape_cast %79 : vector<4x1xf32> to vector<1x4x1xf32>
    %cst_44 = arith.constant 9.99999974E-6 : f32
    %81 = vector.broadcast %cst_44 : f32 to vector<1x4x1xf32>
    %82 = arith.addf %72, %81 : vector<1x4x1xf32>
    %83 = math.rsqrt %82 : vector<1x4x1xf32>
    %84 = arith.mulf %74, %83 : vector<1x4x1xf32>
    %85 = arith.mulf %66, %84 : vector<1x4x1xf32>
    %86 = arith.subf %76, %85 : vector<1x4x1xf32>
    %87 = vector.broadcast %84 : vector<1x4x1xf32> to vector<2x4x256xf32>
    %88 = arith.mulf %55, %87 : vector<2x4x256xf32>
    %89 = vector.broadcast %86 : vector<1x4x1xf32> to vector<2x4x256xf32>
    %90 = arith.addf %88, %89 : vector<2x4x256xf32>
    %c0_45 = arith.constant 0 : index
    %c0_46 = arith.constant 0 : index
    %c0_47 = arith.constant 0 : index
    %91 = vector.load %arg6[%c0_45, %c0_46, %c0_47] : memref<2x4x256xf32, #tpu.memory_space<vmem>>, vector<2x4x256xf32>
    tpu.vector_store %arg6[%c0_45, %c0_46, %c0_47], %90 {strides = array<i32>} : memref<2x4x256xf32, #tpu.memory_space<vmem>>, vector<2x4x256xf32>,
    %92 = vector.shape_cast %78 : vector<1x4x1xf32> to vector<4x1xf32>
    %cst_48 = arith.constant 0.899999976 : f32
    %93 = vector.broadcast %cst_48 : f32 to vector<4x1xf32>
    %94 = arith.mulf %93, %92 : vector<4x1xf32>
    %95 = vector.shape_cast %66 : vector<1x4x1xf32> to vector<4x1xf32>
    %cst_49 = arith.constant 1.000000e-01 : f32
    %96 = vector.broadcast %cst_49 : f32 to vector<4x1xf32>
    %97 = arith.mulf %96, %95 : vector<4x1xf32>
    %98 = arith.addf %94, %97 : vector<4x1xf32>
    %c0_50 = arith.constant 0 : index
    %c0_51 = arith.constant 0 : index
    %99 = vector.load %arg8[%c0_50, %c0_51] : memref<4x2xf32, #tpu.memory_space<vmem>>, vector<4x1xf32>
    tpu.vector_store %arg8[%c0_50, %c0_51], %98 {strides = array<i32>} : memref<4x2xf32, #tpu.memory_space<vmem>>, vector<4x1xf32>,
    %100 = vector.shape_cast %80 : vector<1x4x1xf32> to vector<4x1xf32>
    %cst_52 = arith.constant 0.899999976 : f32
    %101 = vector.broadcast %cst_52 : f32 to vector<4x1xf32>
    %102 = arith.mulf %101, %100 : vector<4x1xf32>
    %103 = vector.shape_cast %72 : vector<1x4x1xf32> to vector<4x1xf32>
    %cst_53 = arith.constant 1.00195694 : f32
    %104 = vector.broadcast %cst_53 : f32 to vector<4x1xf32>
    %105 = arith.mulf %104, %103 : vector<4x1xf32>
    %cst_54 = arith.constant 1.000000e-01 : f32
    %106 = vector.broadcast %cst_54 : f32 to vector<4x1xf32>
    %107 = arith.mulf %106, %105 : vector<4x1xf32>
    %108 = arith.addf %102, %107 : vector<4x1xf32>
    %c0_55 = arith.constant 0 : index
    %c1_56 = arith.constant 1 : index
    %109 = vector.load %arg8[%c0_55, %c1_56] : memref<4x2xf32, #tpu.memory_space<vmem>>, vector<4x1xf32>
    tpu.vector_store %arg8[%c0_55, %c1_56], %108 {strides = array<i32>} : memref<4x2xf32, #tpu.memory_space<vmem>>, vector<4x1xf32>,
    return
  }
  func.func @transform_0(%arg0: i32) -> (i32, i32, i32) {
    %c0_i32 = arith.constant 0 : i32
    %c0_i32_0 = arith.constant 0 : i32
    %c0_i32_1 = arith.constant 0 : i32
    return %c0_i32, %arg0, %c0_i32_0 : i32, i32, i32
  }
  func.func @transform_1(%arg0: i32) -> (i32, i32, i32) {
    %c0_i32 = arith.constant 0 : i32
    %c0_i32_0 = arith.constant 0 : i32
    %c0_i32_1 = arith.constant 0 : i32
    return %c0_i32, %arg0, %c0_i32_0 : i32, i32, i32
  }
  func.func @transform_2(%arg0: i32) -> (i32, i32) {
    %c0_i32 = arith.constant 0 : i32
    %c0_i32_0 = arith.constant 0 : i32
    return %arg0, %c0_i32 : i32, i32
  }
  func.func @transform_3(%arg0: i32) -> (i32, i32) {
    %c0_i32 = arith.constant 0 : i32
    %c0_i32_0 = arith.constant 0 : i32
    return %arg0, %c0_i32 : i32, i32
  }
  func.func @transform_4(%arg0: i32) -> (i32, i32, i32) {
    %c0_i32 = arith.constant 0 : i32
    %c0_i32_0 = arith.constant 0 : i32
    %c0_i32_1 = arith.constant 0 : i32
    return %c0_i32, %arg0, %c0_i32_0 : i32, i32, i32
  }
  func.func @transform_5(%arg0: i32) -> (i32, i32, i32) {
    %c0_i32 = arith.constant 0 : i32
    %c0_i32_0 = arith.constant 0 : i32
    %c0_i32_1 = arith.constant 0 : i32
    return %c0_i32, %arg0, %c0_i32_0 : i32, i32, i32
  }
  func.func @transform_6(%arg0: i32) -> (i32, i32) {
    %c0_i32 = arith.constant 0 : i32
    %c0_i32_0 = arith.constant 0 : i32
    return %arg0, %c0_i32 : i32, i32
  }
  func.func @transform_7(%arg0: i32) -> (i32, i32) {
    %c0_i32 = arith.constant 0 : i32
    %c0_i32_0 = arith.constant 0 : i32
    return %arg0, %c0_i32 : i32, i32
  }
}

</mosaic_0001>

<llo_original>
// kernel: tpu_custom_call.1
$region0: #{tpu_custom_call.1}
  #allocation0 [shape = 'u32[]', space=smem, size = 0x4, offset = 0x4, fixed_abs, tag = 'smem constant byte address 0x4 - core index']
  #allocation1 [shape = 'u32[144,128]{1,0:T(1,128)}', space=vmem, size = 0x12000, scoped, tag = 'internal scratch']
  %s0 = inlined_call_operand.hbm [shape: f32[2,4,256], index: 0, kind: input, shape index: {}]
  %s1 = inlined_call_operand.hbm [shape: f32[2,4,256], index: 1, kind: input, shape index: {}]
  %s2 = inlined_call_operand.hbm [shape: f32[4,4], index: 2, kind: input, shape index: {}]
  %s3 = inlined_call_operand.vmem [shape: f32[4,4], index: 3, kind: input, shape index: {}]
  %s4 = inlined_call_operand.hbm [shape: f32[2,4,256], index: 4, kind: output, shape index: {0}]
  %s5 = inlined_call_operand.hbm [shape: f32[2,4,256], index: 5, kind: output, shape index: {1}]
  %s6 = inlined_call_operand.vmem [shape: f32[4,2], index: 6, kind: output, shape index: {2}]
  %s7 = inlined_call_operand.vmem [shape: f32[4,2], index: 7, kind: output, shape index: {3}]
  %8 = xla_tuple %s4, %s5, %s6, %s7
  %s9 = sld [smem:[#allocation0]]
  $region62: #{tpu_custom_call.1} parent=0
    _
  %s11 = ssub.s32 1, %s9
  %s12 = scalar_select 0, %s11, %s9
  $region1: #{tpu_custom_call.1} parent=0
    #allocation2 [shape = 'u8[8192]{0}', space=vmem, size = 0x2000, scoped, tag = 'input window, operand 0, single buffered']
    #allocation3 [shape = 's32[1]{0}', space=sflag, size = 0x4, scoped, tag = 'scoped memory for tpu_custom_call.1']
    #allocation4 [shape = 's32[1]{0}', space=sflag, size = 0x4, scoped, tag = 'scoped memory for tpu_custom_call.1']
    #allocation5 [shape = 'u8[8192]{0}', space=vmem, size = 0x2000, scoped, tag = 'input window, operand 1, single buffered']
    #allocation6 [shape = 's32[1]{0}', space=sflag, size = 0x4, scoped, tag = 'scoped memory for tpu_custom_call.1']
    #allocation7 [shape = 'u8[2048]{0}', space=vmem, size = 0x800, scoped, tag = 'input window, operand 2, single buffered']
    #allocation8 [shape = 'u8[8192]{0}', space=vmem, size = 0x2000, scoped, tag = 'output window, operand 0, single buffered']
    #allocation9 [shape = 'u8[8192]{0}', space=vmem, size = 0x2000, scoped, tag = 'output window, operand 1, single buffered']
    #allocation10 [shape = 's32[1]{0}', space=sflag, size = 0x4, scoped, tag = 'scoped memory for tpu_custom_call.1']
    %13 = vsyncpa [#allocation3], 0
    %14 = vsyncpa [#allocation6], 0
    %15 = vsyncpa [#allocation4], 0
    %16 = vsyncpa [#allocation10], 0
    // Predicated region
    $region2: #{tpu_custom_call.1} parent=1 // pred_check
      _
    $region3: #{tpu_custom_call.1} parent=1 // pred_check_branch
      %18 = sbr.rel (0) target = $region5
    $region4: #{tpu_custom_call.1} parent=1 // pred_region
      %s20 = ssub.s32 256, 256
      %21 = vsyncadd [#allocation3], %s20
      %s22 = sshll.u32 [#allocation2], 4
      %s23 = int_to_ptr.vmem [resolvable:$true] %s22
      %28 = dma.hbm_to_vmem [thread:$0]  %s0, 256, %s23, [#allocation3], 128, 128, 8
    $region5: #{tpu_custom_call.1} parent=1 // pred_fallthru
      _
    // Predicated region
    $region6: #{tpu_custom_call.1} parent=1 // pred_check
      _
    $region7: #{tpu_custom_call.1} parent=1 // pred_check_branch
      %30 = sbr.rel (0) target = $region9
    $region8: #{tpu_custom_call.1} parent=1 // pred_region
      %s32 = ssub.s32 256, 256
      %33 = vsyncadd [#allocation6], %s32
      %s34 = sshll.u32 [#allocation5], 4
      %s35 = int_to_ptr.vmem [resolvable:$true] %s34
      %40 = dma.hbm_to_vmem [thread:$0]  %s1, 256, %s35, [#allocation6], 128, 128, 8
    $region9: #{tpu_custom_call.1} parent=1 // pred_fallthru
      _
    // Predicated region
    $region10: #{tpu_custom_call.1} parent=1 // pred_check
      _
    $region11: #{tpu_custom_call.1} parent=1 // pred_check_branch
      %42 = sbr.rel (0) target = $region13
    $region12: #{tpu_custom_call.1} parent=1 // pred_region
      %s44 = ssub.s32 64, 64
      %45 = vsyncadd [#allocation6], %s44
      %s47 = sshll.u32 [#allocation7], 4
      %s48 = int_to_ptr.vmem [resolvable:$true] %s47
      %50 = dma.hbm_to_vmem [thread:$0]  %s2, 64, %s48, [#allocation6]
    $region13: #{tpu_custom_call.1} parent=1 // pred_fallthru
      _
    // Predicated region
    $region14: #{tpu_custom_call.1} parent=1 // pred_check
      _
    $region15: #{tpu_custom_call.1} parent=1 // pred_check_branch
      %52 = sbr.rel (0) target = $region17
    $region16: #{tpu_custom_call.1} parent=1 // pred_region
      _
    $region17: #{tpu_custom_call.1} parent=1 // pred_fallthru
      _
    // Predicated region
    $region18: #{tpu_custom_call.1} parent=1 // pred_check
      _
    $region19: #{tpu_custom_call.1} parent=1 // pred_check_branch
      %54 = sbr.rel (0) target = $region21
    $region20: #{tpu_custom_call.1} parent=1 // pred_region
      %55 = dma.done [#allocation3], 256
    $region21: #{tpu_custom_call.1} parent=1 // pred_fallthru
      _
    // Predicated region
    $region22: #{tpu_custom_call.1} parent=1 // pred_check
      _
    $region23: #{tpu_custom_call.1} parent=1 // pred_check_branch
      %57 = sbr.rel (0) target = $region25
    $region24: #{tpu_custom_call.1} parent=1 // pred_region
      %58 = dma.done [#allocation6], 256
    $region25: #{tpu_custom_call.1} parent=1 // pred_fallthru
      _
    // Predicated region
    $region26: #{tpu_custom_call.1} parent=1 // pred_check
      _
    $region27: #{tpu_custom_call.1} parent=1 // pred_check_branch
      %60 = sbr.rel (0) target = $region29
    $region28: #{tpu_custom_call.1} parent=1 // pred_region
      %61 = dma.done [#allocation6], 64
    $region29: #{tpu_custom_call.1} parent=1 // pred_fallthru
      _
    %v62 = vld [vmem:[#allocation2] sm:$0xff]
    %v63 = vld [vmem:[#allocation2 + $0x8] sm:$0xff]
    %v66 = vcombine.high %v62, %v62
    %v67 = vcombine.high %v63, %v63
    %vm70 = vcmask 1043456
    %v71 = vsel %vm70, %v62, 0.0
    %v72 = vsel %vm70, %v66, 0.0
    %v73 = vadd.f32 %v71, %v72
    %74 = vadd.xlane.f32.xlu0 %v73
    %v75 = vpop.xlane.xlu0 %74
    %v76 = vsel %vm70, %v63, 0.0
    %v77 = vsel %vm70, %v67, 0.0
    %v78 = vadd.f32 %v76, %v77
    %79 = vadd.xlane.f32.xlu0 %v78
    %v80 = vpop.xlane.xlu0 %79
    %v81 = vsel %vm70, %v75, 0.0
    %v82 = vsel %vm70, %v80, 0.0
    %v83 = vadd.f32 %v81, %v82
    %v84 = vmul.f32 %v62, %v62
    %v85 = vmul.f32 %v63, %v63
    %v88 = vcombine.high %v84, %v84
    %v89 = vcombine.high %v85, %v85
    %v92 = vsel %vm70, %v84, 0.0
    %v93 = vsel %vm70, %v88, 0.0
    %v94 = vadd.f32 %v92, %v93
    %95 = vadd.xlane.f32.xlu0 %v94
    %v96 = vpop.xlane.xlu0 %95
    %v97 = vsel %vm70, %v85, 0.0
    %v98 = vsel %vm70, %v89, 0.0
    %v99 = vadd.f32 %v97, %v98
    %100 = vadd.xlane.f32.xlu0 %v99
    %v101 = vpop.xlane.xlu0 %100
    %v102 = vsel %vm70, %v96, 0.0
    %v103 = vsel %vm70, %v101, 0.0
    %v104 = vadd.f32 %v102, %v103
    %v105 = vmul.f32 %v83, 0.001953125
    %v106 = vmul.f32 %v83, %v105
    %v107 = vsub.f32 %v104, %v106
    %v108 = vmul.f32 %v107, 0.001953125
    %v109 = vmax.f32 %v108, 0.0
    %v110 = vld [vmem:[#allocation7] sm:$0xf]
    %v111 = vadd.f32 %v109, 1e-05
    %v112 = vrsqrt.pop %v111
    %v113 = vmul.f32 %v110, %v112
    %v114 = vmul.f32 %v105, %v113
    %116 = vrot.lane.b32.xlu0 %v114, 1
    %v117 = vpop.permute.xlu0 %116
    %v119 = vsub.f32 %v110, %v117
    %121 = vset.pattern.permute.xlu0 0
    %122 = vperm.xlu0 %121, %v113
    %v123 = vpop.permute.xlu0 %122
    %v125 = vunpack.c.l.s4 839922192
    %v126 = vunpack.c.0.s8 %v125
    %v127 = vlaneseq
    %v128 = vshrl.u32 %v127, 7
    %v129 = vsub.s32 %v126, %v128
    %v130 = vrot.slane %v123, %v129
    %v132 = vmul.f32 %v62, %v130
    %v133 = vmul.f32 %v63, %v130
    %135 = vset.pattern.permute.xlu0 1
    %136 = vperm.xlu0 %135, %v119
    %v137 = vpop.permute.xlu0 %136
    %v139 = vunpack.c.l.s4 839922192
    %v140 = vunpack.c.0.s8 %v139
    %v141 = vlaneseq
    %v142 = vshrl.u32 %v141, 7
    %v143 = vsub.s32 %v140, %v142
    %v144 = vrot.slane %v137, %v143
    %v146 = vadd.f32 %v132, %v144
    %v147 = vadd.f32 %v133, %v144
    %148 = vst [vmem:[#allocation8] sm:$0xff] %v146
    %149 = vst [vmem:[#allocation8 + $0x8] sm:$0xff] %v147
    %v150 = vmul.f32 %v110, 0.9
    %v151 = vmul.f32 %v105, 0.1
    %v152 = vadd.f32 %v150, %v151
    %154 = vrot.lane.b32.xlu0 %v152, 126
    %v155 = vpop.permute.xlu0 %154
    %vm157 = vcmask 3072
    %158 = vst.msk [vmem:[%s6] sm:$0xf] %vm157, %v155
    %v159 = vmul.f32 %v109, 1.0019569
    %v160 = vmul.f32 %v159, 0.1
    %v161 = vadd.f32 %v150, %v160
    %163 = vrot.lane.b32.xlu0 %v161, 126
    %v164 = vpop.permute.xlu0 %163
    %vm166 = vcmask 11272
    %167 = vst.msk [vmem:[%s6] sm:$0xf] %vm166, %v164
    %v168 = vld [vmem:[#allocation5] sm:$0xff]
    %v169 = vld [vmem:[#allocation5 + $0x8] sm:$0xff]
    %v172 = vcombine.high %v168, %v168
    %v173 = vcombine.high %v169, %v169
    %v176 = vsel %vm70, %v168, 0.0
    %v177 = vsel %vm70, %v172, 0.0
    %v178 = vadd.f32 %v176, %v177
    %179 = vadd.xlane.f32.xlu0 %v178
    %v180 = vpop.xlane.xlu0 %179
    %v181 = vsel %vm70, %v169, 0.0
    %v182 = vsel %vm70, %v173, 0.0
    %v183 = vadd.f32 %v181, %v182
    %184 = vadd.xlane.f32.xlu0 %v183
    %v185 = vpop.xlane.xlu0 %184
    %v186 = vsel %vm70, %v180, 0.0
    %v187 = vsel %vm70, %v185, 0.0
    %v188 = vadd.f32 %v186, %v187
    %v189 = vmul.f32 %v168, %v168
    %v190 = vmul.f32 %v169, %v169
    %v193 = vcombine.high %v189, %v189
    %v194 = vcombine.high %v190, %v190
    %v197 = vsel %vm70, %v189, 0.0
    %v198 = vsel %vm70, %v193, 0.0
    %v199 = vadd.f32 %v197, %v198
    %200 = vadd.xlane.f32.xlu0 %v199
    %v201 = vpop.xlane.xlu0 %200
    %v202 = vsel %vm70, %v190, 0.0
    %v203 = vsel %vm70, %v194, 0.0
    %v204 = vadd.f32 %v202, %v203
    %205 = vadd.xlane.f32.xlu0 %v204
    %v206 = vpop.xlane.xlu0 %205
    %v207 = vsel %vm70, %v201, 0.0
    %v208 = vsel %vm70, %v206, 0.0
    %v209 = vadd.f32 %v207, %v208
    %v210 = vmul.f32 %v188, 0.001953125
    %v211 = vmul.f32 %v188, %v210
    %v212 = vsub.f32 %v209, %v211
    %v213 = vmul.f32 %v212, 0.001953125
    %v214 = vmax.f32 %v213, 0.0
    %v215 = vld [vmem:[%s3] sm:$0xf]
    %v216 = vadd.f32 %v214, 1e-05
    %v217 = vrsqrt.pop %v216
    %v218 = vmul.f32 %v215, %v217
    %v219 = vmul.f32 %v210, %v218
    %221 = vrot.lane.b32.xlu0 %v219, 1
    %v222 = vpop.permute.xlu0 %221
    %v224 = vsub.f32 %v215, %v222
    %226 = vset.pattern.permute.xlu0 0
    %227 = vperm.xlu0 %226, %v218
    %v228 = vpop.permute.xlu0 %227
    %v230 = vunpack.c.l.s4 839922192
    %v231 = vunpack.c.0.s8 %v230
    %v232 = vlaneseq
    %v233 = vshrl.u32 %v232, 7
    %v234 = vsub.s32 %v231, %v233
    %v235 = vrot.slane %v228, %v234
    %v237 = vmul.f32 %v168, %v235
    %v238 = vmul.f32 %v169, %v235
    %240 = vset.pattern.permute.xlu0 1
    %241 = vperm.xlu0 %240, %v224
    %v242 = vpop.permute.xlu0 %241
    %v244 = vunpack.c.l.s4 839922192
    %v245 = vunpack.c.0.s8 %v244
    %v246 = vlaneseq
    %v247 = vshrl.u32 %v246, 7
    %v248 = vsub.s32 %v245, %v247
    %v249 = vrot.slane %v242, %v248
    %v251 = vadd.f32 %v237, %v249
    %v252 = vadd.f32 %v238, %v249
    %253 = vst [vmem:[#allocation9] sm:$0xff] %v251
    %254 = vst [vmem:[#allocation9 + $0x8] sm:$0xff] %v252
    %v255 = vmul.f32 %v215, 0.9
    %v256 = vmul.f32 %v210, 0.1
    %v257 = vadd.f32 %v255, %v256
    %259 = vrot.lane.b32.xlu0 %v257, 126
    %v260 = vpop.permute.xlu0 %259
    %262 = vst.msk [vmem:[%s7] sm:$0xf] %vm157, %v260
    %v263 = vmul.f32 %v214, 1.0019569
    %v264 = vmul.f32 %v263, 0.1
    %v265 = vadd.f32 %v255, %v264
    %267 = vrot.lane.b32.xlu0 %v265, 126
    %v268 = vpop.permute.xlu0 %267
    %270 = vst.msk [vmem:[%s7] sm:$0xf] %vm166, %v268
    // Predicated region
    $region30: #{tpu_custom_call.1} parent=1 // pred_check
      _
    $region31: #{tpu_custom_call.1} parent=1 // pred_check_branch
      %272 = sbr.rel (0) target = $region33
    $region32: #{tpu_custom_call.1} parent=1 // pred_region
      %s274 = ssub.s32 256, 256
      %275 = vsyncadd [#allocation4], %s274
      %s276 = sshll.u32 [#allocation8], 4
      %s277 = int_to_ptr.vmem [resolvable:$true] %s276
      %282 = dma.vmem_to_hbm [thread:$0]  %s277, 256, %s4, [#allocation4], 128, 128, 8
    $region33: #{tpu_custom_call.1} parent=1 // pred_fallthru
      _
    // Predicated region
    $region34: #{tpu_custom_call.1} parent=1 // pred_check
      _
    $region35: #{tpu_custom_call.1} parent=1 // pred_check_branch
      %284 = sbr.rel (0) target = $region37
    $region36: #{tpu_custom_call.1} parent=1 // pred_region
      %s286 = ssub.s32 256, 256
      %287 = vsyncadd [#allocation10], %s286
      %s288 = sshll.u32 [#allocation9], 4
      %s289 = int_to_ptr.vmem [resolvable:$true] %s288
      %294 = dma.vmem_to_hbm [thread:$0]  %s289, 256, %s5, [#allocation10], 128, 128, 8
    $region37: #{tpu_custom_call.1} parent=1 // pred_fallthru
      _
    // Predicated region
    $region38: #{tpu_custom_call.1} parent=1 // pred_check
      _
    $region39: #{tpu_custom_call.1} parent=1 // pred_check_branch
      %296 = sbr.rel (0) target = $region41
    $region40: #{tpu_custom_call.1} parent=1 // pred_region
      _
    $region41: #{tpu_custom_call.1} parent=1 // pred_fallthru
      _
    // Predicated region
    $region42: #{tpu_custom_call.1} parent=1 // pred_check
      _
    $region43: #{tpu_custom_call.1} parent=1 // pred_check_branch
      %298 = sbr.rel (0) target = $region45
    $region44: #{tpu_custom_call.1} parent=1 // pred_region
      _
    $region45: #{tpu_custom_call.1} parent=1 // pred_fallthru
      _
    // Predicated region
    $region46: #{tpu_custom_call.1} parent=1 // pred_check
      _
    $region47: #{tpu_custom_call.1} parent=1 // pred_check_branch
      %300 = sbr.rel (0) target = $region49
    $region48: #{tpu_custom_call.1} parent=1 // pred_region
      %301 = dma.done [#allocation4], 256
    $region49: #{tpu_custom_call.1} parent=1 // pred_fallthru
      _
    // Predicated region
    $region50: #{tpu_custom_call.1} parent=1 // pred_check
      _
    $region51: #{tpu_custom_call.1} parent=1 // pred_check_branch
      %303 = sbr.rel (0) target = $region53
    $region52: #{tpu_custom_call.1} parent=1 // pred_region
      %304 = dma.done [#allocation10], 256
    $region53: #{tpu_custom_call.1} parent=1 // pred_fallthru
      _
    // Predicated region
    $region54: #{tpu_custom_call.1} parent=1 // pred_check
      _
    $region55: #{tpu_custom_call.1} parent=1 // pred_check_branch
      %306 = sbr.rel (0) target = $region57
    $region56: #{tpu_custom_call.1} parent=1 // pred_region
      _
    $region57: #{tpu_custom_call.1} parent=1 // pred_fallthru
      _
    // Predicated region
    $region58: #{tpu_custom_call.1} parent=1 // pred_check
      _
    $region59: #{tpu_custom_call.1} parent=1 // pred_check_branch
      %308 = sbr.rel (0) target = $region61
    $region60: #{tpu_custom_call.1} parent=1 // pred_region
      _
    $region61: #{tpu_custom_call.1} parent=1 // pred_fallthru
      _
    %309 = vsyncpa [#allocation3], 1
    %310 = vsyncpa [#allocation6], 1
    %311 = vsyncpa [#allocation4], 1
    %312 = vsyncpa [#allocation10], 1

</llo_original>
